<compile_context>
chip_gen: v5e
topology: v5e:2x2
jax: 0.10.0
libtpu: 0.0.40
codegen_flags: <defaults>
</compile_context>

<pallas_src>
import functools

import jax
import jax.numpy as jnp
from jax import lax
from jax.experimental import pallas as pl
from jax.experimental.pallas import tpu as pltpu


def _nwj_kernel(scores_ref, out_ref, m_scr, acc_scr, dsum_scr, *, n, tm, non_diag):
    i = pl.program_id(0)
    nb = pl.num_programs(0)

    @pl.when(i == 0)
    def _init():
        m_scr[...] = jnp.full((1, 1), -jnp.inf, jnp.float32)
        acc_scr[...] = jnp.zeros((1, 1), jnp.float32)
        dsum_scr[...] = jnp.zeros((1, 1), jnp.float32)

    # Current (tm, n) row tile; cast to f32 *after* the DMA (bf16 passes through HBM).
    shifted = scores_ref[...].astype(jnp.float32) - 1.0

    # ---- online logsumexp over the shifted scores (single HBM pass) ----
    # The running max only needs to be an upper bound of the (possibly diagonal-
    # excluded) set, so the full-tile max is fine even for non_diag=True.
    tile_max = jnp.max(shifted, keepdims=True)                    # (1, 1)
    m_old = m_scr[...]
    m_new = jnp.maximum(m_old, tile_max)
    scale = jnp.exp(m_old - m_new)                                # 0.0 on first tile
    exp_full = jnp.sum(jnp.exp(shifted - m_new), keepdims=True)   # (1, 1)

    # ---- diagonal terms: only the (tm, tm) column block holds the diagonal ----
    start = pl.multiple_of(i * tm, tm)
    d_block = scores_ref[:, pl.ds(start, tm)].astype(jnp.float32)  # (tm, tm)
    r = lax.broadcasted_iota(jnp.int32, (tm, tm), 0)
    c = lax.broadcasted_iota(jnp.int32, (tm, tm), 1)
    diag_vec = jnp.sum(jnp.where(r == c, d_block, 0.0), axis=1, keepdims=True)  # (tm, 1)
    dsum_partial = jnp.sum(diag_vec, keepdims=True)                # (1, 1)

    if non_diag:
        # Remove the diagonal's contribution (O(tm) exps) instead of -inf masking.
        exp_diag = jnp.sum(jnp.exp(diag_vec - 1.0 - m_new), keepdims=True)
        exp_partial = exp_full - exp_diag
    else:
        exp_partial = exp_full

    acc_scr[...] = acc_scr[...] * scale + exp_partial
    m_scr[...] = m_new
    dsum_scr[...] = dsum_scr[...] + dsum_partial

    @pl.when(i == nb - 1)
    def _finalize():
        fn = jnp.float32(n)
        joint = dsum_scr[...] / fn - 1.0                           # mean(diag(scores - 1))
        k = jnp.float32(n * n - n) if non_diag else jnp.float32(n * n)
        lme = m_scr[...] + jnp.log(acc_scr[...]) - jnp.log(k)      # logmeanexp
        out_ref[...] = -(joint + jnp.exp(lme) + 1.0)


def _pick_block_rows(n):
    # Single-block fast path for small n: fixed pallas_call/DMA latency dominates,
    # so grid-step / init / finalize overhead would only add cost there.
    if n <= 1024:
        return n
    # ~4 MiB f32 tile -> ~8 MiB double-buffered; fits scoped VMEM defaults on
    # v5e (16 MiB), v6e (32 MiB) and v7x (32 MiB scoped / 64 MiB physical).
    budget_rows = max(8, (4 * 1024 * 1024) // (n * 4))
    for cand in (1024, 512, 256, 128, 64, 32, 16, 8):
        if cand <= budget_rows and n % cand == 0:
            return cand
    return n  # fallback (n not a multiple of 8): single block


def nwj_forward(scores, non_diag=False, block_rows=None):
    """Pallas implementation of NWJ(non_diag).forward(scores). Returns a scalar f32."""
    n = scores.shape[0]
    assert scores.ndim == 2 and scores.shape[1] == n, "scores must be a square (n, n) matrix"
    tm = _pick_block_rows(n) if block_rows is None else block_rows
    assert n % tm == 0 and (tm == n or tm % 8 == 0), "block_rows must divide n (multiple of 8)"

    kernel = functools.partial(_nwj_kernel, n=n, tm=tm, non_diag=non_diag)
    out = pl.pallas_call(
        kernel,
        out_shape=jax.ShapeDtypeStruct((1, 1), jnp.float32),
        grid=(n // tm,),
        in_specs=[pl.BlockSpec((tm, n), lambda i: (i, 0))],
        out_specs=pl.BlockSpec((1, 1), lambda i: (0, 0)),
        scratch_shapes=[
            pltpu.VMEM((1, 1), jnp.float32),   # running max m
            pltpu.VMEM((1, 1), jnp.float32),   # rescaled exp-sum (sum of exp(x - m))
            pltpu.VMEM((1, 1), jnp.float32),   # sum of diag(scores)
        ],
        compiler_params=pltpu.CompilerParams(dimension_semantics=("arbitrary",)),
    )(scores)
    return out[0, 0]


def _nwj_reference(scores, non_diag=False):
    """Pure-JAX reference mirroring the intended NWJ forward semantics."""
    s = scores.astype(jnp.float32)
    n = s.shape[0]
    shifted = s - 1.0
    joint = jnp.mean(jnp.diag(shifted))
    if non_diag:
        masked = shifted - jnp.diag(jnp.full((n,), jnp.inf, jnp.float32))
        k = n * n - n
    else:
        masked = shifted
        k = n * n
    lme = jax.scipy.special.logsumexp(masked.ravel()) - jnp.log(jnp.float32(k))
    return -(joint + jnp.exp(lme) + 1.0)


if __name__ == "__main__":
    key = jax.random.PRNGKey(0)
    n = 256
    scores = jax.random.normal(key, (n, n), dtype=jnp.float32)

    # Tiled / online-logsumexp path (2 row tiles).
    out_tiled = jax.block_until_ready(nwj_forward(scores, non_diag=False, block_rows=128))
    ref = _nwj_reference(scores, non_diag=False)
    assert jnp.allclose(out_tiled, ref, atol=1e-4, rtol=1e-4), (out_tiled, ref)

    # Single-block fast path, non_diag variant.
    out_nd = jax.block_until_ready(nwj_forward(scores, non_diag=True))
    ref_nd = _nwj_reference(scores, non_diag=True)
    assert jnp.allclose(out_nd, ref_nd, atol=1e-4, rtol=1e-4), (out_nd, ref_nd)

    # bf16 pass-through: no wrapper-side f32 cast, kernel casts per tile after DMA.
    s_bf16 = scores.astype(jnp.bfloat16)
    out_bf16 = jax.block_until_ready(nwj_forward(s_bf16, non_diag=False, block_rows=128))
    ref_bf16 = _nwj_reference(s_bf16, non_diag=False)
    assert jnp.allclose(out_bf16, ref_bf16, atol=1e-3, rtol=1e-3), (out_bf16, ref_bf16)

    print("KERNEL_OK")
</pallas_src>

<mosaic_0001>
module attributes {stable_mosaic.version = 11 : i64} {
  func.func @_nwj_kernel(%arg0: i32, %arg1: memref<128x256xf32, #tpu.memory_space<vmem>>, %arg2: memref<1x1xf32, #tpu.memory_space<vmem>>, %arg3: memref<1x1xf32, #tpu.memory_space<vmem>>, %arg4: memref<1x1xf32, #tpu.memory_space<vmem>>, %arg5: memref<1x1xf32, #tpu.memory_space<vmem>>) attributes {dimension_semantics = [#tpu.dimension_semantics<arbitrary>], iteration_bounds = array<i64: 2>, scalar_prefetch = 0 : i64, scratch_operands = 3 : i64, tpu.core_type = #tpu.core_type<tc>, window_params = [{transform_indices = @transform_0, window_bounds = array<i64: 128, 256>}, {pipeline_mode = #tpu.pipeline_mode<synchronous>, transform_indices = @transform_1, window_bounds = array<i64: 1, 1>}]} {
    %c0_i32 = arith.constant 0 : i32
    %0 = arith.cmpi eq, %arg0, %c0_i32 : i32
    %1 = arith.extui %0 : i1 to i32
    %c0_i32_0 = arith.constant 0 : i32
    %2 = arith.cmpi ne, %1, %c0_i32_0 : i32
    scf.if %2 {
      %cst_21 = arith.constant 0xFF800000 : f32
      %50 = vector.broadcast %cst_21 : f32 to vector<1x1xf32>
      %c0_22 = arith.constant 0 : index
      %c0_23 = arith.constant 0 : index
      %51 = vector.load %arg3[%c0_22, %c0_23] : memref<1x1xf32, #tpu.memory_space<vmem>>, vector<1x1xf32>
      tpu.vector_store %arg3[%c0_22, %c0_23], %50 {strides = array<i32>} : memref<1x1xf32, #tpu.memory_space<vmem>>, vector<1x1xf32>,
      %cst_24 = arith.constant 0.000000e+00 : f32
      %52 = vector.broadcast %cst_24 : f32 to vector<1x1xf32>
      %c0_25 = arith.constant 0 : index
      %c0_26 = arith.constant 0 : index
      %53 = vector.load %arg4[%c0_25, %c0_26] : memref<1x1xf32, #tpu.memory_space<vmem>>, vector<1x1xf32>
      tpu.vector_store %arg4[%c0_25, %c0_26], %52 {strides = array<i32>} : memref<1x1xf32, #tpu.memory_space<vmem>>, vector<1x1xf32>,
      %cst_27 = arith.constant 0.000000e+00 : f32
      %54 = vector.broadcast %cst_27 : f32 to vector<1x1xf32>
      %c0_28 = arith.constant 0 : index
      %c0_29 = arith.constant 0 : index
      %55 = vector.load %arg5[%c0_28, %c0_29] : memref<1x1xf32, #tpu.memory_space<vmem>>, vector<1x1xf32>
      tpu.vector_store %arg5[%c0_28, %c0_29], %54 {strides = array<i32>} : memref<1x1xf32, #tpu.memory_space<vmem>>, vector<1x1xf32>,
    } else {
    }
    %c0 = arith.constant 0 : index
    %c0_1 = arith.constant 0 : index
    %3 = vector.load %arg1[%c0, %c0_1] : memref<128x256xf32, #tpu.memory_space<vmem>>, vector<128x256xf32>
    %cst = arith.constant 1.000000e+00 : f32
    %4 = vector.broadcast %cst : f32 to vector<128x256xf32>
    %5 = arith.subf %3, %4 : vector<128x256xf32>
    %6 = vector.shape_cast %5 : vector<128x256xf32> to vector<1x128x256xf32>
    %cst_2 = arith.constant dense<0xFF800000> : vector<1xf32>
    %7 = vector.multi_reduction <maximumf>, %6, %cst_2 [1, 2] : vector<1x128x256xf32> to vector<1xf32>
    %8 = vector.shape_cast %7 : vector<1xf32> to vector<1x1x1xf32>
    %9 = vector.extract %8[0, 0, 0] : f32 from vector<1x1x1xf32>
    %10 = vector.broadcast %9 : f32 to vector<1x1xf32>
    %c0_3 = arith.constant 0 : index
    %c0_4 = arith.constant 0 : index
    %11 = vector.load %arg3[%c0_3, %c0_4] : memref<1x1xf32, #tpu.memory_space<vmem>>, vector<1x1xf32>
    %12 = arith.maximumf %11, %10 : vector<1x1xf32>
    %13 = arith.subf %11, %12 : vector<1x1xf32>
    %14 = math.exp %13 : vector<1x1xf32>
    %15 = vector.broadcast %12 : vector<1x1xf32> to vector<128x256xf32>
    %16 = arith.subf %5, %15 : vector<128x256xf32>
    %17 = math.exp %16 : vector<128x256xf32>
    %18 = vector.shape_cast %17 : vector<128x256xf32> to vector<1x128x256xf32>
    %cst_5 = arith.constant dense<0.000000e+00> : vector<1xf32>
    %19 = vector.multi_reduction <add>, %18, %cst_5 [1, 2] : vector<1x128x256xf32> to vector<1xf32>
    %20 = vector.shape_cast %19 : vector<1xf32> to vector<1x1x1xf32>
    %21 = vector.extract %20[0, 0, 0] : f32 from vector<1x1x1xf32>
    %22 = vector.broadcast %21 : f32 to vector<1x1xf32>
    %c128_i32 = arith.constant 128 : i32
    %23 = arith.muli %arg0, %c128_i32 : i32
    %24 = tpu.assume_multiple %23, 128 : i32
    %c0_6 = arith.constant 0 : index
    %25 = arith.index_cast %24 : i32 to index
    %26 = vector.load %arg1[%c0_6, %25] : memref<128x256xf32, #tpu.memory_space<vmem>>, vector<128x128xf32>
    %27 = tpu.iota {dimensions = array<i32: 0>} : vector<128x128xi32>
    %28 = tpu.iota {dimensions = array<i32: 1>} : vector<128x128xi32>
    %29 = arith.cmpi eq, %27, %28 : vector<128x128xi32>
    %cst_7 = arith.constant 0.000000e+00 : f32
    %30 = vector.broadcast %cst_7 : f32 to vector<128x128xf32>
    %31 = arith.select %29, %26, %30 : vector<128x128xi1>, vector<128x128xf32>
    %cst_8 = arith.constant dense<0.000000e+00> : vector<128xf32>
    %32 = vector.multi_reduction <add>, %31, %cst_8 [1] : vector<128x128xf32> to vector<128xf32>
    %33 = vector.shape_cast %32 : vector<128xf32> to vector<128x1xf32>
    %34 = vector.shape_cast %33 : vector<128x1xf32> to vector<1x128x1xf32>
    %cst_9 = arith.constant dense<0.000000e+00> : vector<1xf32>
    %35 = vector.multi_reduction <add>, %34, %cst_9 [1, 2] : vector<1x128x1xf32> to vector<1xf32>
    %36 = vector.shape_cast %35 : vector<1xf32> to vector<1x1x1xf32>
    %37 = vector.extract %36[0, 0, 0] : f32 from vector<1x1x1xf32>
    %38 = vector.broadcast %37 : f32 to vector<1x1xf32>
    %c0_10 = arith.constant 0 : index
    %c0_11 = arith.constant 0 : index
    %39 = vector.load %arg4[%c0_10, %c0_11] : memref<1x1xf32, #tpu.memory_space<vmem>>, vector<1x1xf32>
    %40 = arith.mulf %39, %14 : vector<1x1xf32>
    %41 = arith.addf %40, %22 : vector<1x1xf32>
    %c0_12 = arith.constant 0 : index
    %c0_13 = arith.constant 0 : index
    %42 = vector.load %arg4[%c0_12, %c0_13] : memref<1x1xf32, #tpu.memory_space<vmem>>, vector<1x1xf32>
    tpu.vector_store %arg4[%c0_12, %c0_13], %41 {strides = array<i32>} : memref<1x1xf32, #tpu.memory_space<vmem>>, vector<1x1xf32>,
    %c0_14 = arith.constant 0 : index
    %c0_15 = arith.constant 0 : index
    %43 = vector.load %arg3[%c0_14, %c0_15] : memref<1x1xf32, #tpu.memory_space<vmem>>, vector<1x1xf32>
    tpu.vector_store %arg3[%c0_14, %c0_15], %12 {strides = array<i32>} : memref<1x1xf32, #tpu.memory_space<vmem>>, vector<1x1xf32>,
    %c0_16 = arith.constant 0 : index
    %c0_17 = arith.constant 0 : index
    %44 = vector.load %arg5[%c0_16, %c0_17] : memref<1x1xf32, #tpu.memory_space<vmem>>, vector<1x1xf32>
    %45 = arith.addf %44, %38 : vector<1x1xf32>
    %c0_18 = arith.constant 0 : index
    %c0_19 = arith.constant 0 : index
    %46 = vector.load %arg5[%c0_18, %c0_19] : memref<1x1xf32, #tpu.memory_space<vmem>>, vector<1x1xf32>
    tpu.vector_store %arg5[%c0_18, %c0_19], %45 {strides = array<i32>} : memref<1x1xf32, #tpu.memory_space<vmem>>, vector<1x1xf32>,
    %c1_i32 = arith.constant 1 : i32
    %47 = arith.cmpi eq, %arg0, %c1_i32 : i32
    %48 = arith.extui %47 : i1 to i32
    %c0_i32_20 = arith.constant 0 : i32
    %49 = arith.cmpi ne, %48, %c0_i32_20 : i32
    scf.if %49 {
      %c0_21 = arith.constant 0 : index
      %c0_22 = arith.constant 0 : index
      %50 = vector.load %arg5[%c0_21, %c0_22] : memref<1x1xf32, #tpu.memory_space<vmem>>, vector<1x1xf32>
      %cst_23 = arith.constant 2.560000e+02 : f32
      %51 = vector.broadcast %cst_23 : f32 to vector<1x1xf32>
      %52 = arith.divf %50, %51 : vector<1x1xf32>
      %cst_24 = arith.constant 1.000000e+00 : f32
      %53 = vector.broadcast %cst_24 : f32 to vector<1x1xf32>
      %54 = arith.subf %52, %53 : vector<1x1xf32>
      %c0_25 = arith.constant 0 : index
      %c0_26 = arith.constant 0 : index
      %55 = vector.load %arg3[%c0_25, %c0_26] : memref<1x1xf32, #tpu.memory_space<vmem>>, vector<1x1xf32>
      %c0_27 = arith.constant 0 : index
      %c0_28 = arith.constant 0 : index
      %56 = vector.load %arg4[%c0_27, %c0_28] : memref<1x1xf32, #tpu.memory_space<vmem>>, vector<1x1xf32>
      %57 = math.log %56 : vector<1x1xf32>
      %58 = arith.addf %55, %57 : vector<1x1xf32>
      %cst_29 = arith.constant 6.553600e+04 : f32
      %59 = math.log %cst_29 : f32
      %60 = vector.broadcast %59 : f32 to vector<1x1xf32>
      %61 = arith.subf %58, %60 : vector<1x1xf32>
      %62 = math.exp %61 : vector<1x1xf32>
      %63 = arith.addf %54, %62 : vector<1x1xf32>
      %cst_30 = arith.constant 1.000000e+00 : f32
      %64 = vector.broadcast %cst_30 : f32 to vector<1x1xf32>
      %65 = arith.addf %63, %64 : vector<1x1xf32>
      %cst_31 = arith.constant 0.000000e+00 : f32
      %66 = vector.broadcast %cst_31 : f32 to vector<1x1xf32>
      %67 = arith.subf %66, %65 : vector<1x1xf32>
      %c0_32 = arith.constant 0 : index
      %c0_33 = arith.constant 0 : index
      %68 = vector.load %arg2[%c0_32, %c0_33] : memref<1x1xf32, #tpu.memory_space<vmem>>, vector<1x1xf32>
      tpu.vector_store %arg2[%c0_32, %c0_33], %67 {strides = array<i32>} : memref<1x1xf32, #tpu.memory_space<vmem>>, vector<1x1xf32>,
    } else {
    }
    return
  }
  func.func @transform_0(%arg0: i32) -> (i32, i32) {
    %c0_i32 = arith.constant 0 : i32
    %c0_i32_0 = arith.constant 0 : i32
    return %arg0, %c0_i32 : i32, i32
  }
  func.func @transform_1(%arg0: i32) -> (i32, i32) {
    %c0_i32 = arith.constant 0 : i32
    %c0_i32_0 = arith.constant 0 : i32
    %c0_i32_1 = arith.constant 0 : i32
    return %c0_i32, %c0_i32_0 : i32, i32
  }
}

</mosaic_0001>

<llo_original>
// kernel: tpu_custom_call.1
$region0: #{tpu_custom_call.1}
  #allocation0 [shape = 'u32[]', space=smem, size = 0x4, offset = 0x4, fixed_abs, tag = 'smem constant byte address 0x4 - core index']
  #allocation1 [shape = 'u32[72,128]{1,0:T(1,128)}', space=vmem, size = 0x9000, scoped, tag = 'internal scratch']
  #allocation2 [shape = 'f32[1,1]{1,0:T(1,128)}', space=vmem, size = 0x200, scoped, tag = 'scratch operand']
  #allocation3 [shape = 'f32[1,1]{1,0:T(1,128)}', space=vmem, size = 0x200, scoped, tag = 'scratch operand']
  #allocation4 [shape = 'f32[1,1]{1,0:T(1,128)}', space=vmem, size = 0x200, scoped, tag = 'scratch operand']
  %s0 = inlined_call_operand.hbm [shape: f32[256,256], index: 0, kind: input, shape index: {}]
  %s1 = inlined_call_operand.hbm [shape: f32[1,1], index: 1, kind: output, shape index: {}]
  %s2 = sld [smem:[#allocation0]]
  $region49: #{tpu_custom_call.1} parent=0
    _
  %s4 = ssub.s32 1, %s2
  %s5 = scalar_select 0, %s4, %s2
  $region1: #{tpu_custom_call.1} parent=0
    #allocation5 [shape = 'u8[262144]{0}', space=vmem, size = 0x40000, scoped, tag = 'input window, operand 0']
    #allocation6 [shape = 's32[2]{0}', space=sflag, size = 0x8, scoped, tag = 'scoped memory for tpu_custom_call.1']
    #allocation7 [shape = 's32[2]{0}', space=sflag, size = 0x8, scoped, tag = 'scoped memory for tpu_custom_call.1']
    #allocation8 [shape = 'u8[512]{0}', space=vmem, size = 0x400, scoped, tag = 'output window, operand 0, single buffered']
    %6 = vsyncpa [#allocation6], 0
    %s7 = scalar_lea.sflag [#allocation6], 1
    %8 = vsyncpa %s7, 0
    %9 = vsyncpa [#allocation7], 0
    loop: start=0, step=1, limit=4
    $region2: #{tpu_custom_call.1} parent=1 // loop_pre_header
      _
    $region3: #{tpu_custom_call.1} parent=1 // loop_header
      %s11 = sphi 0, %s15
      %p12 = scmp.ge.s32.totalorder %s11, 4
      %s21 = sphi 0, %s23
      %s24 = sphi 0, %s21
      %s25 = sphi 0, %s24
      %s41 = sphi 0, %s25
      %s45 = sphi 0, %s45
      %s47 = sphi 0, %s45
      %s48 = sphi 0, %s47
      %s62 = sphi 0, %s48
    $region4: #{tpu_custom_call.1} parent=1 // loop_header_branch
      %14 = sbr.rel (%p12) target = $region8
    $region5: #{tpu_custom_call.1} parent=1 // loop_body
      %s16 = ssub.s32 %s11, 1
      %s17 = ssub.s32 %s11, 2
      %s18 = sadd.s32 %s11, 1
      %s19 = ssub.s32 %s11, %s18
      %p20 = scmp.eq.s32.totalorder %s19, 0
      %s22 = sadd.s32 %s21, 1
      %s23 = scalar_select %p20, %s21, %s22
      %p26 = pneg %p20
      %p27 = scmp.eq.s32.totalorder %s11, 1
      %p28 = por %p26, %p27
      %p29 = scmp.ne.s32.totalorder %s21, %s24
      %p30 = scmp.eq.s32.totalorder %s11, 0
      %p31 = por %p29, %p30
      %p32 = scmp.ne.s32.totalorder %s21, %s24
      %p33 = scmp.eq.s32.totalorder %s16, 1
      %p34 = por %p32, %p33
      %p35 = scmp.ne.s32.totalorder %s24, %s25
      %p36 = scmp.eq.s32.totalorder %s16, 0
      %p37 = por %p35, %p36
      %p38 = scmp.ne.s32.totalorder %s24, %s25
      %p39 = scmp.eq.s32.totalorder %s17, 1
      %p40 = por %p38, %p39
      %p42 = scmp.ne.s32.totalorder %s25, %s41
      %p43 = scmp.eq.s32.totalorder %s17, 0
      %p44 = por %p42, %p43
      %s46 = sadd.s32 %s45, 1
      %p49 = scmp.eq.s32.totalorder %s11, 1
      %p50 = scmp.ne.s32.totalorder %s45, %s47
      %p51 = scmp.eq.s32.totalorder %s11, 0
      %p52 = por %p50, %p51
      %p53 = scmp.ne.s32.totalorder %s45, %s47
      %p54 = scmp.eq.s32.totalorder %s16, 1
      %p55 = por %p53, %p54
      %p56 = scmp.ne.s32.totalorder %s47, %s48
      %p57 = scmp.eq.s32.totalorder %s16, 0
      %p58 = por %p56, %p57
      %p59 = scmp.ne.s32.totalorder %s47, %s48
      %p60 = scmp.eq.s32.totalorder %s17, 1
      %p61 = por %p59, %p60
      %p63 = scmp.ne.s32.totalorder %s48, %s62
      %p64 = scmp.eq.s32.totalorder %s17, 0
      %p65 = por %p63, %p64
      %p66 = scmp.le.s32.totalorder 1, %s11
      %p67 = scmp.lt.s32.totalorder %s11, 3
      %p68 = pnand %p66, %p67
      %p69 = pneg %p68
      // Predicated region
      $region9: #{tpu_custom_call.1} parent=5 // pred_check
        _
      $region10: #{tpu_custom_call.1} parent=5 // pred_check_branch
        %71 = sbr.rel (%p68) target = $region12
      $region11: #{tpu_custom_call.1} parent=5 // pred_region
        %s72 = ssub.s32 %s11, 1
      $region12: #{tpu_custom_call.1} parent=5 // pred_fallthru
        _
      %p73 = scmp.lt.s32.totalorder %s11, 2
      // Predicated region
      $region13: #{tpu_custom_call.1} parent=5 // pred_check
        %p74 = pneg %p73
      $region14: #{tpu_custom_call.1} parent=5 // pred_check_branch
        %76 = sbr.rel (%p74) target = $region16
      $region15: #{tpu_custom_call.1} parent=5 // pred_region
        // Predicated region
        $region17: #{tpu_custom_call.1} parent=15 // pred_check
          %p77 = pneg %p31
        $region18: #{tpu_custom_call.1} parent=15 // pred_check_branch
          %79 = sbr.rel (%p77) target = $region20
        $region19: #{tpu_custom_call.1} parent=15 // pred_region
          %s80 = sand.u32 %s21, 1
          %s81 = scalar_lea.sflag [#allocation6], %s80
          %s82 = sand.u32 %s21, 1
          %s83 = smul.addr %s82, 256
          %s84 = scalar_lea.vmem [#allocation5], %s83
          %s85 = smul.u32 16, %s11
          %87 = vsyncadd %s81, 0
          %s88 = smul.addr %s85, 2
          %s89 = smul.addr %s88, 8
          %s90 = scalar_lea.hbm %s0, %s89
          %s91 = sshll.u32 %s90, 4
          %s92 = int_to_ptr.hbm [resolvable:$true] %s91
          %s93 = sshll.u32 %s84, 4
          %s94 = int_to_ptr.vmem [resolvable:$true] %s93
          %99 = dma.hbm_to_vmem [thread:$0]  %s92, 4096, %s94, %s81, 256, 256, 16
        $region20: #{tpu_custom_call.1} parent=15 // pred_fallthru
          _
      $region16: #{tpu_custom_call.1} parent=5 // pred_fallthru
        _
      %p100 = scmp.le.s32.totalorder 1, %s11
      %p101 = scmp.lt.s32.totalorder %s11, 3
      %p102 = pnand %p100, %p101
      %p103 = pneg %p102
      // Predicated region
      $region21: #{tpu_custom_call.1} parent=5 // pred_check
        _
      $region22: #{tpu_custom_call.1} parent=5 // pred_check_branch
        %105 = sbr.rel (%p102) target = $region24
      $region23: #{tpu_custom_call.1} parent=5 // pred_region
        %s106 = ssub.s32 %s11, 1
        %s107 = sand.u32 %s24, 1
        %s108 = scalar_lea.sflag [#allocation6], %s107
        %s109 = sand.u32 %s24, 1
        %s110 = smul.addr %s109, 256
        %s111 = scalar_lea.vmem [#allocation5], %s110
        // Predicated region
        $region25: #{tpu_custom_call.1} parent=23 // pred_check
          %p112 = pneg %p37
        $region26: #{tpu_custom_call.1} parent=23 // pred_check_branch
          %114 = sbr.rel (%p112) target = $region28
        $region27: #{tpu_custom_call.1} parent=23 // pred_region
          %116 = dma.done %s108, 4096
        $region28: #{tpu_custom_call.1} parent=23 // pred_fallthru
          _
        %s117 = sand.u32 %s24, 1
        %s118 = scalar_lea.sflag [#allocation6], %s117
        %s119 = sand.u32 %s24, 1
        %s120 = smul.addr %s119, 256
        %s121 = scalar_lea.vmem [#allocation5], %s120
        %p122 = pneg %p37
        %p123 = pneg %p34
        %p124 = pneg %p58
        %p125 = pneg %p55
        %s126 = smul.u32 16, %s16
        %p127 = scmp.eq.s32.totalorder %s16, 0
        // Predicated region
        $region29: #{tpu_custom_call.1} parent=23 // pred_check
          %p128 = pneg %p127
        $region30: #{tpu_custom_call.1} parent=23 // pred_check_branch
          %130 = sbr.rel (%p128) target = $region32
        $region31: #{tpu_custom_call.1} parent=23 // pred_region
          %vm131 = vcmask 0
          %132 = vst.msk [vmem:[#allocation2] sm:$0x1] %vm131, -inf
          %133 = vst.msk [vmem:[#allocation3] sm:$0x1] %vm131, 0.0
          %134 = vst.msk [vmem:[#allocation4] sm:$0x1] %vm131, 0.0
        $region32: #{tpu_custom_call.1} parent=23 // pred_fallthru
          _
        %v135 = vld [vmem:[%s111] sm:$0xff]
        %v136 = vld [vmem:[%s111 + $0x8] sm:$0xff]
        %v137 = vld [vmem:[%s111 + $0x10] sm:$0xff]
        %v138 = vld [vmem:[%s111 + $0x18] sm:$0xff]
        %v139 = vld [vmem:[%s111 + $0x20] sm:$0xff]
        %v140 = vld [vmem:[%s111 + $0x28] sm:$0xff]
        %v141 = vld [vmem:[%s111 + $0x30] sm:$0xff]
        %v142 = vld [vmem:[%s111 + $0x38] sm:$0xff]
        %v143 = vld [vmem:[%s111 + $0x40] sm:$0xff]
        %v144 = vld [vmem:[%s111 + $0x48] sm:$0xff]
        %v145 = vld [vmem:[%s111 + $0x50] sm:$0xff]
        %v146 = vld [vmem:[%s111 + $0x58] sm:$0xff]
        %v147 = vld [vmem:[%s111 + $0x60] sm:$0xff]
        %v148 = vld [vmem:[%s111 + $0x68] sm:$0xff]
        %v149 = vld [vmem:[%s111 + $0x70] sm:$0xff]
        %v150 = vld [vmem:[%s111 + $0x78] sm:$0xff]
        %v151 = vld [vmem:[%s111 + $0x80] sm:$0xff]
        %v152 = vld [vmem:[%s111 + $0x88] sm:$0xff]
        %v153 = vld [vmem:[%s111 + $0x90] sm:$0xff]
        %v154 = vld [vmem:[%s111 + $0x98] sm:$0xff]
        %v155 = vld [vmem:[%s111 + $0xa0] sm:$0xff]
        %v156 = vld [vmem:[%s111 + $0xa8] sm:$0xff]
        %v157 = vld [vmem:[%s111 + $0xb0] sm:$0xff]
        %v158 = vld [vmem:[%s111 + $0xb8] sm:$0xff]
        %v159 = vld [vmem:[%s111 + $0xc0] sm:$0xff]
        %v160 = vld [vmem:[%s111 + $0xc8] sm:$0xff]
        %v161 = vld [vmem:[%s111 + $0xd0] sm:$0xff]
        %v162 = vld [vmem:[%s111 + $0xd8] sm:$0xff]
        %v163 = vld [vmem:[%s111 + $0xe0] sm:$0xff]
        %v164 = vld [vmem:[%s111 + $0xe8] sm:$0xff]
        %v165 = vld [vmem:[%s111 + $0xf0] sm:$0xff]
        %v166 = vld [vmem:[%s111 + $0xf8] sm:$0xff]
        %v167 = vsub.f32 %v135, 1.0
        %v168 = vsub.f32 %v136, 1.0
        %v169 = vsub.f32 %v137, 1.0
        %v170 = vsub.f32 %v138, 1.0
        %v171 = vsub.f32 %v139, 1.0
        %v172 = vsub.f32 %v140, 1.0
        %v173 = vsub.f32 %v141, 1.0
        %v174 = vsub.f32 %v142, 1.0
        %v175 = vsub.f32 %v143, 1.0
        %v176 = vsub.f32 %v144, 1.0
        %v177 = vsub.f32 %v145, 1.0
        %v178 = vsub.f32 %v146, 1.0
        %v179 = vsub.f32 %v147, 1.0
        %v180 = vsub.f32 %v148, 1.0
        %v181 = vsub.f32 %v149, 1.0
        %v182 = vsub.f32 %v150, 1.0
        %v183 = vsub.f32 %v151, 1.0
        %v184 = vsub.f32 %v152, 1.0
        %v185 = vsub.f32 %v153, 1.0
        %v186 = vsub.f32 %v154, 1.0
        %v187 = vsub.f32 %v155, 1.0
        %v188 = vsub.f32 %v156, 1.0
        %v189 = vsub.f32 %v157, 1.0
        %v190 = vsub.f32 %v158, 1.0
        %v191 = vsub.f32 %v159, 1.0
        %v192 = vsub.f32 %v160, 1.0
        %v193 = vsub.f32 %v161, 1.0
        %v194 = vsub.f32 %v162, 1.0
        %v195 = vsub.f32 %v163, 1.0
        %v196 = vsub.f32 %v164, 1.0
        %v197 = vsub.f32 %v165, 1.0
        %v198 = vsub.f32 %v166, 1.0
        %v199 = vmax.f32 %v167, %v171
        %v200 = vmax.f32 %v168, %v172
        %v201 = vmax.f32 %v169, %v173
        %v202 = vmax.f32 %v170, %v174
        %v203 = vmax.f32 %v199, %v175
        %v204 = vmax.f32 %v200, %v176
        %v205 = vmax.f32 %v201, %v177
        %v206 = vmax.f32 %v202, %v178
        %v207 = vmax.f32 %v203, %v179
        %v208 = vmax.f32 %v204, %v180
        %v209 = vmax.f32 %v205, %v181
        %v210 = vmax.f32 %v206, %v182
        %v211 = vmax.f32 %v207, %v183
        %v212 = vmax.f32 %v208, %v184
        %v213 = vmax.f32 %v209, %v185
        %v214 = vmax.f32 %v210, %v186
        %v215 = vmax.f32 %v211, %v187
        %v216 = vmax.f32 %v212, %v188
        %v217 = vmax.f32 %v213, %v189
        %v218 = vmax.f32 %v214, %v190
        %v219 = vmax.f32 %v215, %v191
        %v220 = vmax.f32 %v216, %v192
        %v221 = vmax.f32 %v217, %v193
        %v222 = vmax.f32 %v218, %v194
        %v223 = vmax.f32 %v219, %v195
        %v224 = vmax.f32 %v220, %v196
        %v225 = vmax.f32 %v221, %v197
        %v226 = vmax.f32 %v222, %v198
        %v227 = vmax.f32 %v223, %v224
        %v228 = vmax.f32 %v225, %v226
        %v229 = vmax.f32 %v227, %v228
        %230 = vmax.xlane.f32.xlu0 %v229
        %v231 = vpop.xlane.xlu0 %230
        %v232 = vrot.slane %v231, 4
        %v233 = vmax.f32 %v231, %v232
        %v234 = vrot.slane %v233, 2
        %v235 = vmax.f32 %v233, %v234
        %v236 = vrot.slane %v235, 1
        %v237 = vmax.f32 %v235, %v236
        %s238 = vtos %v237
        %v239 = vstv %s238
        %v240 = vld [vmem:[#allocation2] sm:$0x1]
        %v241 = vmax.f32 %v240, %v239
        %v242 = vsub.f32 %v240, %v241
        %v243 = vmul.f32 %v242, 1.442695
        %v244 = vpow.pop %v243
        %v246 = vperm.slane %v241, 0
        %247 = vset.pattern.permute.xlu0 0
        %248 = vperm.xlu0 %247, %v246
        %v249 = vpop.permute.xlu0 %248
        %v251 = vsub.f32 %v167, %v249
        %v252 = vsub.f32 %v168, %v249
        %v253 = vsub.f32 %v169, %v249
        %v254 = vsub.f32 %v170, %v249
        %v255 = vsub.f32 %v171, %v249
        %v256 = vsub.f32 %v172, %v249
        %v257 = vsub.f32 %v173, %v249
        %v258 = vsub.f32 %v174, %v249
        %v259 = vsub.f32 %v175, %v249
        %v260 = vsub.f32 %v176, %v249
        %v261 = vsub.f32 %v177, %v249
        %v262 = vsub.f32 %v178, %v249
        %v263 = vsub.f32 %v179, %v249
        %v264 = vsub.f32 %v180, %v249
        %v265 = vsub.f32 %v181, %v249
        %v266 = vsub.f32 %v182, %v249
        %v267 = vsub.f32 %v183, %v249
        %v268 = vsub.f32 %v184, %v249
        %v269 = vsub.f32 %v185, %v249
        %v270 = vsub.f32 %v186, %v249
        %v271 = vsub.f32 %v187, %v249
        %v272 = vsub.f32 %v188, %v249
        %v273 = vsub.f32 %v189, %v249
        %v274 = vsub.f32 %v190, %v249
        %v275 = vsub.f32 %v191, %v249
        %v276 = vsub.f32 %v192, %v249
        %v277 = vsub.f32 %v193, %v249
        %v278 = vsub.f32 %v194, %v249
        %v279 = vsub.f32 %v195, %v249
        %v280 = vsub.f32 %v196, %v249
        %v281 = vsub.f32 %v197, %v249
        %v282 = vsub.f32 %v198, %v249
        %v283 = vmul.f32 %v251, 1.442695
        %v284 = vpow.pop %v283
        %v285 = vmul.f32 %v252, 1.442695
        %v286 = vpow.pop %v285
        %v287 = vmul.f32 %v253, 1.442695
        %v288 = vpow.pop %v287
        %v289 = vmul.f32 %v254, 1.442695
        %v290 = vpow.pop %v289
        %v291 = vmul.f32 %v255, 1.442695
        %v292 = vpow.pop %v291
        %v293 = vmul.f32 %v256, 1.442695
        %v294 = vpow.pop %v293
        %v295 = vmul.f32 %v257, 1.442695
        %v296 = vpow.pop %v295
        %v297 = vmul.f32 %v258, 1.442695
        %v298 = vpow.pop %v297
        %v299 = vmul.f32 %v259, 1.442695
        %v300 = vpow.pop %v299
        %v301 = vmul.f32 %v260, 1.442695
        %v302 = vpow.pop %v301
        %v303 = vmul.f32 %v261, 1.442695
        %v304 = vpow.pop %v303
        %v305 = vmul.f32 %v262, 1.442695
        %v306 = vpow.pop %v305
        %v307 = vmul.f32 %v263, 1.442695
        %v308 = vpow.pop %v307
        %v309 = vmul.f32 %v264, 1.442695
        %v310 = vpow.pop %v309
        %v311 = vmul.f32 %v265, 1.442695
        %v312 = vpow.pop %v311
        %v313 = vmul.f32 %v266, 1.442695
        %v314 = vpow.pop %v313
        %v315 = vmul.f32 %v267, 1.442695
        %v316 = vpow.pop %v315
        %v317 = vmul.f32 %v268, 1.442695
        %v318 = vpow.pop %v317
        %v319 = vmul.f32 %v269, 1.442695
        %v320 = vpow.pop %v319
        %v321 = vmul.f32 %v270, 1.442695
        %v322 = vpow.pop %v321
        %v323 = vmul.f32 %v271, 1.442695
        %v324 = vpow.pop %v323
        %v325 = vmul.f32 %v272, 1.442695
        %v326 = vpow.pop %v325
        %v327 = vmul.f32 %v273, 1.442695
        %v328 = vpow.pop %v327
        %v329 = vmul.f32 %v274, 1.442695
        %v330 = vpow.pop %v329
        %v331 = vmul.f32 %v275, 1.442695
        %v332 = vpow.pop %v331
        %v333 = vmul.f32 %v276, 1.442695
        %v334 = vpow.pop %v333
        %v335 = vmul.f32 %v277, 1.442695
        %v336 = vpow.pop %v335
        %v337 = vmul.f32 %v278, 1.442695
        %v338 = vpow.pop %v337
        %v339 = vmul.f32 %v279, 1.442695
        %v340 = vpow.pop %v339
        %v341 = vmul.f32 %v280, 1.442695
        %v342 = vpow.pop %v341
        %v343 = vmul.f32 %v281, 1.442695
        %v344 = vpow.pop %v343
        %v345 = vmul.f32 %v282, 1.442695
        %v346 = vpow.pop %v345
        %v347 = vadd.f32 %v284, %v286
        %v348 = vadd.f32 %v347, %v288
        %v349 = vadd.f32 %v348, %v290
        %v350 = vadd.f32 %v349, %v292
        %v351 = vadd.f32 %v350, %v294
        %v352 = vadd.f32 %v351, %v296
        %v353 = vadd.f32 %v352, %v298
        %v354 = vadd.f32 %v353, %v300
        %v355 = vadd.f32 %v354, %v302
        %v356 = vadd.f32 %v355, %v304
        %v357 = vadd.f32 %v356, %v306
        %v358 = vadd.f32 %v357, %v308
        %v359 = vadd.f32 %v358, %v310
        %v360 = vadd.f32 %v359, %v312
        %v361 = vadd.f32 %v360, %v314
        %v362 = vadd.f32 %v361, %v316
        %v363 = vadd.f32 %v362, %v318
        %v364 = vadd.f32 %v363, %v320
        %v365 = vadd.f32 %v364, %v322
        %v366 = vadd.f32 %v365, %v324
        %v367 = vadd.f32 %v366, %v326
        %v368 = vadd.f32 %v367, %v328
        %v369 = vadd.f32 %v368, %v330
        %v370 = vadd.f32 %v369, %v332
        %v371 = vadd.f32 %v370, %v334
        %v372 = vadd.f32 %v371, %v336
        %v373 = vadd.f32 %v372, %v338
        %v374 = vadd.f32 %v373, %v340
        %v375 = vadd.f32 %v374, %v342
        %v376 = vadd.f32 %v375, %v344
        %v377 = vadd.f32 %v376, %v346
        %378 = vadd.xlane.f32.xlu0 %v377
        %v379 = vpop.xlane.xlu0 %378
        %v380 = vrot.slane %v379, 4
        %v381 = vadd.f32 %v379, %v380
        %v382 = vrot.slane %v381, 2
        %v383 = vadd.f32 %v381, %v382
        %v384 = vrot.slane %v383, 1
        %v385 = vadd.f32 %v383, %v384
        %s386 = vtos %v385
        %v387 = vstv %s386
        %s388 = smul.u32 %s16, 128
        %s389 = sshra.s32 %s388, 7
        %s390 = sand.u32 %s388, 127
        %s391 = smul.addr %s389, 8
        %s392 = scalar_lea.vmem %s111, %s391 [#allocation5]
        %v393 = vld [vmem:[%s392] sm:$0xff]
        %v394 = vld [vmem:[%s392 + $0x10] sm:$0xff]
        %v395 = vld [vmem:[%s392 + $0x20] sm:$0xff]
        %v396 = vld [vmem:[%s392 + $0x30] sm:$0xff]
        %v397 = vld [vmem:[%s392 + $0x40] sm:$0xff]
        %v398 = vld [vmem:[%s392 + $0x50] sm:$0xff]
        %v399 = vld [vmem:[%s392 + $0x60] sm:$0xff]
        %v400 = vld [vmem:[%s392 + $0x70] sm:$0xff]
        %v401 = vld [vmem:[%s392 + $0x80] sm:$0xff]
        %v402 = vld [vmem:[%s392 + $0x90] sm:$0xff]
        %v403 = vld [vmem:[%s392 + $0xa0] sm:$0xff]
        %v404 = vld [vmem:[%s392 + $0xb0] sm:$0xff]
        %v405 = vld [vmem:[%s392 + $0xc0] sm:$0xff]
        %v406 = vld [vmem:[%s392 + $0xd0] sm:$0xff]
        %v407 = vld [vmem:[%s392 + $0xe0] sm:$0xff]
        %v408 = vld [vmem:[%s392 + $0xf0] sm:$0xff]
        %v409 = vlaneseq
        %v410 = vshrl.u32 %v409, 7
        %v411 = vadd.s32 %v410, 8
        %v412 = vadd.s32 %v410, 16
        %v413 = vadd.s32 %v410, 24
        %v414 = vadd.s32 %v410, 32
        %v415 = vadd.s32 %v410, 40
        %v416 = vadd.s32 %v410, 48
        %v417 = vadd.s32 %v410, 56
        %v418 = vadd.s32 %v410, 64
        %v419 = vadd.s32 %v410, 72
        %v420 = vadd.s32 %v410, 80
        %v421 = vadd.s32 %v410, 88
        %v422 = vadd.s32 %v410, 96
        %v423 = vadd.s32 %v410, 104
        %v424 = vadd.s32 %v410, 112
        %v425 = vadd.s32 %v410, 120
        %v426 = vlaneseq
        %v427 = vand.u32 %v426, 127
        %vm428 = vcmp.eq.s32.totalorder %v410, %v427
        %vm429 = vcmp.eq.s32.totalorder %v411, %v427
        %vm430 = vcmp.eq.s32.totalorder %v412, %v427
        %vm431 = vcmp.eq.s32.totalorder %v413, %v427
        %vm432 = vcmp.eq.s32.totalorder %v414, %v427
        %vm433 = vcmp.eq.s32.totalorder %v415, %v427
        %vm434 = vcmp.eq.s32.totalorder %v416, %v427
        %vm435 = vcmp.eq.s32.totalorder %v417, %v427
        %vm436 = vcmp.eq.s32.totalorder %v418, %v427
        %vm437 = vcmp.eq.s32.totalorder %v419, %v427
        %vm438 = vcmp.eq.s32.totalorder %v420, %v427
        %vm439 = vcmp.eq.s32.totalorder %v421, %v427
        %vm440 = vcmp.eq.s32.totalorder %v422, %v427
        %vm441 = vcmp.eq.s32.totalorder %v423, %v427
        %vm442 = vcmp.eq.s32.totalorder %v424, %v427
        %vm443 = vcmp.eq.s32.totalorder %v425, %v427
        %v444 = vsel %vm428, %v393, 0.0
        %v445 = vsel %vm429, %v394, 0.0
        %v446 = vsel %vm430, %v395, 0.0
        %v447 = vsel %vm431, %v396, 0.0
        %v448 = vsel %vm432, %v397, 0.0
        %v449 = vsel %vm433, %v398, 0.0
        %v450 = vsel %vm434, %v399, 0.0
        %v451 = vsel %vm435, %v400, 0.0
        %v452 = vsel %vm436, %v401, 0.0
        %v453 = vsel %vm437, %v402, 0.0
        %v454 = vsel %vm438, %v403, 0.0
        %v455 = vsel %vm439, %v404, 0.0
        %v456 = vsel %vm440, %v405, 0.0
        %v457 = vsel %vm441, %v406, 0.0
        %v458 = vsel %vm442, %v407, 0.0
        %v459 = vsel %vm443, %v408, 0.0
        %460 = vadd.xlane.f32.xlu0 %v444
        %v461 = vpop.xlane.xlu0 %460
        %462 = vadd.xlane.f32.xlu0 %v445
        %v463 = vpop.xlane.xlu0 %462
        %464 = vadd.xlane.f32.xlu0 %v446
        %v465 = vpop.xlane.xlu0 %464
        %466 = vadd.xlane.f32.xlu0 %v447
        %v467 = vpop.xlane.xlu0 %466
        %468 = vadd.xlane.f32.xlu0 %v448
        %v469 = vpop.xlane.xlu0 %468
        %470 = vadd.xlane.f32.xlu0 %v449
        %v471 = vpop.xlane.xlu0 %470
        %472 = vadd.xlane.f32.xlu0 %v450
        %v473 = vpop.xlane.xlu0 %472
        %474 = vadd.xlane.f32.xlu0 %v451
        %v475 = vpop.xlane.xlu0 %474
        %476 = vadd.xlane.f32.xlu0 %v452
        %v477 = vpop.xlane.xlu0 %476
        %478 = vadd.xlane.f32.xlu0 %v453
        %v479 = vpop.xlane.xlu0 %478
        %480 = vadd.xlane.f32.xlu0 %v454
        %v481 = vpop.xlane.xlu0 %480
        %482 = vadd.xlane.f32.xlu0 %v455
        %v483 = vpop.xlane.xlu0 %482
        %484 = vadd.xlane.f32.xlu0 %v456
        %v485 = vpop.xlane.xlu0 %484
        %486 = vadd.xlane.f32.xlu0 %v457
        %v487 = vpop.xlane.xlu0 %486
        %488 = vadd.xlane.f32.xlu0 %v458
        %v489 = vpop.xlane.xlu0 %488
        %490 = vadd.xlane.f32.xlu0 %v459
        %v491 = vpop.xlane.xlu0 %490
        %vm492 = vcmask 7168
        %v493 = vsel %vm492, %v461, 0.0
        %v494 = vsel %vm492, %v463, 0.0
        %v495 = vadd.f32 %v493, %v494
        %v496 = vsel %vm492, %v465, 0.0
        %v497 = vadd.f32 %v495, %v496
        %v498 = vsel %vm492, %v467, 0.0
        %v499 = vadd.f32 %v497, %v498
        %v500 = vsel %vm492, %v469, 0.0
        %v501 = vadd.f32 %v499, %v500
        %v502 = vsel %vm492, %v471, 0.0
        %v503 = vadd.f32 %v501, %v502
        %v504 = vsel %vm492, %v473, 0.0
        %v505 = vadd.f32 %v503, %v504
        %v506 = vsel %vm492, %v475, 0.0
        %v507 = vadd.f32 %v505, %v506
        %v508 = vsel %vm492, %v477, 0.0
        %v509 = vadd.f32 %v507, %v508
        %v510 = vsel %vm492, %v479, 0.0
        %v511 = vadd.f32 %v509, %v510
        %v512 = vsel %vm492, %v481, 0.0
        %v513 = vadd.f32 %v511, %v512
        %v514 = vsel %vm492, %v483, 0.0
        %v515 = vadd.f32 %v513, %v514
        %v516 = vsel %vm492, %v485, 0.0
        %v517 = vadd.f32 %v515, %v516
        %v518 = vsel %vm492, %v487, 0.0
        %v519 = vadd.f32 %v517, %v518
        %v520 = vsel %vm492, %v489, 0.0
        %v521 = vadd.f32 %v519, %v520
        %v522 = vsel %vm492, %v491, 0.0
        %v523 = vadd.f32 %v521, %v522
        %524 = vadd.xlane.f32.xlu0 %v523
        %v525 = vpop.xlane.xlu0 %524
        %v526 = vrot.slane %v525, 4
        %v527 = vadd.f32 %v525, %v526
        %v528 = vrot.slane %v527, 2
        %v529 = vadd.f32 %v527, %v528
        %v530 = vrot.slane %v529, 1
        %v531 = vadd.f32 %v529, %v530
        %s532 = vtos %v531
        %v533 = vstv %s532
        %v534 = vld [vmem:[#allocation3] sm:$0x1]
        %v535 = vmul.f32 %v534, %v244
        %v536 = vadd.f32 %v535, %v387
        %vm537 = vcmask 0
        %538 = vst.msk [vmem:[#allocation3] sm:$0x1] %vm537, %v536
        %539 = vst.msk [vmem:[#allocation2] sm:$0x1] %vm537, %v241
        %v540 = vld [vmem:[#allocation4] sm:$0x1]
        %v541 = vadd.f32 %v540, %v533
        %542 = vst.msk [vmem:[#allocation4] sm:$0x1] %vm537, %v541
        %p543 = scmp.eq.s32.totalorder %s16, 1
        // Predicated region
        $region33: #{tpu_custom_call.1} parent=23 // pred_check
          %p544 = pneg %p543
        $region34: #{tpu_custom_call.1} parent=23 // pred_check_branch
          %546 = sbr.rel (%p544) target = $region36
        $region35: #{tpu_custom_call.1} parent=23 // pred_region
          %v547 = vld [vmem:[#allocation4] sm:$0x1]
          %v548 = vrcp.pop 256.0
          %v549 = vmul.f32 256.0, %v548
          %v550 = vsub.f32 1.0, %v549
          %v551 = vmul.f32 %v548, %v550
          %v552 = vadd.f32 %v548, %v551
          %vm553 = vweird.f32 %v548
          %v554 = vsel %vm553, %v548, %v552
          %v555 = vmul.f32 %v547, %v554
          %v556 = vsub.f32 %v555, 1.0
          %v557 = vld [vmem:[#allocation2] sm:$0x1]
          %v558 = vld [vmem:[#allocation3] sm:$0x1]
          %v559 = vlog2.pop %v558
          %v560 = vmul.f32 %v559, 0.6931472
          %v561 = vadd.f32 %v557, %v560
          %v562 = vsub.f32 %v561, 11.090355
          %v563 = vmul.f32 %v562, 1.442695
          %v564 = vpow.pop %v563
          %v565 = vadd.f32 %v556, %v564
          %v566 = vadd.f32 %v565, 1.0
          %v567 = vsub.f32 0.0, %v566
          %568 = vst.msk [vmem:[#allocation8] sm:$0x1] %vm537, %v567
        $region36: #{tpu_custom_call.1} parent=23 // pred_fallthru
          _
        // Predicated region
        $region37: #{tpu_custom_call.1} parent=23 // pred_check
          %p569 = pneg %p55
        $region38: #{tpu_custom_call.1} parent=23 // pred_check_branch
          %571 = sbr.rel (%p569) target = $region40
        $region39: #{tpu_custom_call.1} parent=23 // pred_region
          %573 = vsyncadd [#allocation7], 0
          %s575 = sshll.u32 [#allocation8], 4
          %s576 = int_to_ptr.vmem [resolvable:$true] %s575
          %s577 = sshll.u32 %s1, 4
          %s578 = int_to_ptr.hbm [resolvable:$true] %s577
          %580 = dma.vmem_to_hbm [thread:$0]  %s576, 16, %s578, [#allocation7]
        $region40: #{tpu_custom_call.1} parent=23 // pred_fallthru
          _
        // Predicated region
        $region41: #{tpu_custom_call.1} parent=23 // pred_check
          %p581 = pneg %p55
        $region42: #{tpu_custom_call.1} parent=23 // pred_check_branch
          %583 = sbr.rel (%p581) target = $region44
        $region43: #{tpu_custom_call.1} parent=23 // pred_region
          %585 = dma.done [#allocation7], 16
        $region44: #{tpu_custom_call.1} parent=23 // pred_fallthru
          _
      $region24: #{tpu_custom_call.1} parent=5 // pred_fallthru
        _
      %p586 = scmp.le.s32.totalorder 2, %s11
      // Predicated region
      $region45: #{tpu_custom_call.1} parent=5 // pred_check
        %p587 = pneg %p586
      $region46: #{tpu_custom_call.1} parent=5 // pred_check_branch
        %589 = sbr.rel (%p587) target = $region48
      $region47: #{tpu_custom_call.1} parent=5 // pred_region
        %s590 = ssub.s32 %s11, 2
      $region48: #{tpu_custom_call.1} parent=5 // pred_fallthru
        _
    $region6: #{tpu_custom_call.1} parent=1 // loop_footer
      %s15 = sadd.s32 1, %s11
    $region7: #{tpu_custom_call.1} parent=1 // loop_footer_branch
      %10 = sbr.rel target = $region3
    $region8: #{tpu_custom_call.1} parent=1 // loop_exit
      _
    %591 = vsyncpa [#allocation6], 1
    %s592 = scalar_lea.sflag [#allocation6], 1
    %593 = vsyncpa %s592, 1
    %594 = vsyncpa [#allocation7], 1
    %s595 = scalar_lea.sflag [#allocation7], 1
    %596 = vsyncpa %s595, 1

</llo_original>
